<compile_context>
chip_gen: v7x
topology: tpu7x:2x2x1
jax: 0.10.0
libtpu: 0.0.40
codegen_flags: <defaults>
</compile_context>

<pallas_src>
import functools

import jax
import jax.numpy as jnp
import numpy as np
from jax.experimental import pallas as pl
from jax.experimental.pallas import tpu as pltpu

_NEG_HALF_LOG_2PI = -0.5 * float(np.log(2.0 * np.pi))


def _round_up(x, m):
    return (x + m - 1) // m * m


# ----------------------------------------------------------------------------
# Fused Pallas kernel: 3 matmuls, 2 tanh, sample + log_prob, two dense stores.
# ----------------------------------------------------------------------------
def ac_fused_kernel(state_ref, noise_ref, p_ref, a_out_ref, lp_out_ref, *,
                    s_dim, a_dim, f_dim, off_w2, off_wh, off_vec, use_bf16):
    x = state_ref[...]                                    # (TB, S) f32

    # Static views into the packed parameter slab (no extra DMAs).
    w1 = p_ref[0:s_dim, :]                                # (S, 128)   [w1p | w1v]
    w2 = p_ref[off_w2:off_w2 + f_dim, :]                  # (128, 128) blockdiag(w2p, w2v)
    wh = p_ref[off_wh:off_wh + f_dim, :]                  # (128, 128) [wc | wv | 0]
    b1 = p_ref[off_vec + 0:off_vec + 1, :]                # (1, 128)
    b2 = p_ref[off_vec + 1:off_vec + 2, :]                # (1, 128)
    bh = p_ref[off_vec + 2:off_vec + 3, :]                # (1, 128)
    log_std = p_ref[off_vec + 3:off_vec + 4, :]           # (1, 128), zeros beyond A

    def mxu(t):
        # bf16 MXU inputs (f32 accumulation preserved below) when requested.
        return t.astype(jnp.bfloat16) if use_bf16 else t

    # Fused policy+value encoders (both branches share each matmul).
    h = jnp.tanh(jnp.dot(mxu(x), mxu(w1), preferred_element_type=jnp.float32) + b1)
    h = jnp.tanh(jnp.dot(mxu(h), mxu(w2), preferred_element_type=jnp.float32) + b2)
    head = jnp.dot(mxu(h), mxu(wh), preferred_element_type=jnp.float32) + bh
    # head cols [0:A] = mean, col A = v, rest unused.

    # Widen noise (TB, A) -> (TB, F) in-kernel with explicit zeros so lanes
    # >= A are exactly 0 (keeps col A == value head output).
    noise_small = noise_ref[...]                          # (TB, A) f32
    zeros_tail = jnp.zeros((noise_small.shape[0], f_dim - a_dim), jnp.float32)
    noise = jnp.concatenate([noise_small, zeros_tail], axis=-1)   # (TB, F)

    std = jnp.exp(log_std)                                # (1, F)

    # Full-vreg, lane-dense stores; wrapper slices a / v / lp.
    a_out_ref[...] = head + std * noise                   # cols[:A]=a, col A = v
    # Normal.log_prob(a) with a-mean == std*noise (divide-free, exact algebra).
    lp_out_ref[...] = -0.5 * (noise * noise) - log_std + _NEG_HALF_LOG_2PI


# ----------------------------------------------------------------------------
# Parameter packing: one (rows, 128) f32 slab, offsets 8-row aligned.
# ----------------------------------------------------------------------------
def pack_params(p, state_size, action_size, hidden=(64, 64)):
    h1, h2 = hidden
    assert (h1, h2) == (64, 64), "fused kernel assumes 64/64 hidden layers"
    S, A, F = state_size, action_size, 2 * h1             # F = 128 fused width
    assert 2 * A + 1 <= F

    off_w2 = _round_up(S, 8)
    off_wh = off_w2 + F
    off_vec = off_wh + F
    n_rows = _round_up(off_vec + 4, 8)

    slab = jnp.zeros((n_rows, F), jnp.float32)
    # layer 1: [w1p | w1v]
    slab = slab.at[0:S, :].set(jnp.concatenate([p["w1p"], p["w1v"]], axis=1))
    # layer 2: block-diagonal
    slab = slab.at[off_w2:off_w2 + h1, 0:h1].set(p["w2p"])
    slab = slab.at[off_w2 + h1:off_w2 + F, h1:F].set(p["w2v"])
    # heads: cols[0:A] = action head (from policy half), col A = value head
    slab = slab.at[off_wh:off_wh + h1, 0:A].set(p["wc"])
    slab = slab.at[off_wh + h1:off_wh + F, A:A + 1].set(p["wv"])
    # bias / log_std rows
    slab = slab.at[off_vec + 0:off_vec + 1, :].set(
        jnp.concatenate([p["b1p"], p["b1v"]], axis=1))
    slab = slab.at[off_vec + 1:off_vec + 2, :].set(
        jnp.concatenate([p["b2p"], p["b2v"]], axis=1))
    slab = slab.at[off_vec + 2:off_vec + 3, 0:A].set(p["bc"])
    slab = slab.at[off_vec + 2:off_vec + 3, A:A + 1].set(p["bv"])
    slab = slab.at[off_vec + 3:off_vec + 4, 0:A].set(p["log_std"])

    meta = dict(s_dim=S, a_dim=A, f_dim=F,
                off_w2=off_w2, off_wh=off_wh, off_vec=off_vec, n_rows=n_rows)
    return slab, meta


# ----------------------------------------------------------------------------
# Wrapper: single pallas_call, batch grid marked "parallel" (megacore).
# ----------------------------------------------------------------------------
def ac_forward(state, packed, meta, noise, *, block_b=1024, use_bf16=False):
    B, S = state.shape
    A, F = meta["a_dim"], meta["f_dim"]
    assert S == meta["s_dim"]
    assert noise.shape == (B, A)

    # Tile choice: large tiles amortize the ~0.35us per-step pipeline overhead,
    # but keep >=2 grid steps when B allows it so both v7x TensorCores engage.
    half = _round_up(pl.cdiv(B, 2), 8)
    tb = min(block_b, max(8, half))
    b_pad = _round_up(B, tb)
    if b_pad != B:
        state = jnp.pad(state, ((0, b_pad - B), (0, 0)))
        noise = jnp.pad(noise, ((0, b_pad - B), (0, 0)))
    # Per-tile VMEM at tb=1024 is ~1.2 MB double-buffered; default scoped VMEM
    # is plenty.  Set pltpu.CompilerParams(vmem_limit_bytes=...) only if
    # block_b is pushed past ~4096 (mind v7x's 64 MiB physical VMEM).

    kernel = functools.partial(
        ac_fused_kernel,
        s_dim=S, a_dim=A, f_dim=F,
        off_w2=meta["off_w2"], off_wh=meta["off_wh"], off_vec=meta["off_vec"],
        use_bf16=use_bf16)

    cost = pl.CostEstimate(
        flops=2 * b_pad * F * (S + 2 * F),
        transcendentals=2 * b_pad * F,
        bytes_accessed=4 * (b_pad * (S + A + 2 * F) + int(packed.size)),
    )

    out_a, out_lp = pl.pallas_call(
        kernel,
        out_shape=(jax.ShapeDtypeStruct((b_pad, F), jnp.float32),
                   jax.ShapeDtypeStruct((b_pad, F), jnp.float32)),
        grid_spec=pltpu.PrefetchScalarGridSpec(
            num_scalar_prefetch=0,
            grid=(b_pad // tb,),
            in_specs=[
                pl.BlockSpec((tb, S), lambda i: (i, 0)),              # state tile
                pl.BlockSpec((tb, A), lambda i: (i, 0)),              # noise tile (unpadded)
                pl.BlockSpec((meta["n_rows"], F), lambda i: (0, 0)),  # params (resident)
            ],
            out_specs=[
                pl.BlockSpec((tb, F), lambda i: (i, 0)),              # a_full  [a | v | .]
                pl.BlockSpec((tb, F), lambda i: (i, 0)),              # lp_full [lp | ...]
            ],
        ),
        compiler_params=pltpu.CompilerParams(
            dimension_semantics=("parallel",)),
        cost_estimate=cost,
    )(state, noise, packed)

    a = out_a[:B, 0:A]
    v = out_a[:B, A:A + 1]
    lp = out_lp[:B, 0:A]
    return a, v, lp


# ----------------------------------------------------------------------------
# Deterministic parameter init (mirrors AC.__init__ with ortho_init=True,
# encoder_pi = encoder_v = [64, 64], activation = Tanh, log_std_init = 0.0).
# Weights stored transposed: (in_features, out_features).
# ----------------------------------------------------------------------------
def _orthogonal(key, out_dim, in_dim, gain):
    m = jax.random.normal(key, (out_dim, in_dim), dtype=jnp.float32)
    if out_dim >= in_dim:
        q, r = jnp.linalg.qr(m)
    else:
        q, r = jnp.linalg.qr(m.T)
        q, r = q.T, r
    q = q * jnp.sign(jnp.diagonal(r))[None, :] if out_dim >= in_dim else \
        q * jnp.sign(jnp.diagonal(r))[:, None]
    w = gain * q                       # (out_dim, in_dim)
    return w.T.astype(jnp.float32)     # stored transposed: (in, out)


def make_params(key, state_size, action_size, hidden=(64, 64)):
    h1, h2 = hidden
    keys = jax.random.split(key, 6)
    g_enc = float(np.sqrt(2.0))
    return {
        "w1p": _orthogonal(keys[0], h1, state_size, g_enc),
        "b1p": jnp.zeros((1, h1), jnp.float32),
        "w2p": _orthogonal(keys[1], h2, h1, g_enc),
        "b2p": jnp.zeros((1, h2), jnp.float32),
        "wc": _orthogonal(keys[2], action_size, h2, 0.01),
        "bc": jnp.zeros((1, action_size), jnp.float32),
        "w1v": _orthogonal(keys[3], h1, state_size, g_enc),
        "b1v": jnp.zeros((1, h1), jnp.float32),
        "w2v": _orthogonal(keys[4], h2, h1, g_enc),
        "b2v": jnp.zeros((1, h2), jnp.float32),
        "wv": _orthogonal(keys[5], 1, h2, 1.0),
        "bv": jnp.zeros((1, 1), jnp.float32),
        "log_std": jnp.zeros((1, action_size), jnp.float32),
    }


# ----------------------------------------------------------------------------
# Pure-JAX reference (unfused, original log_prob form) for a sanity check.
# ----------------------------------------------------------------------------
def ac_forward_ref(state, p, noise):
    h = jnp.tanh(state @ p["w1p"] + p["b1p"])
    h = jnp.tanh(h @ p["w2p"] + p["b2p"])
    mean = h @ p["wc"] + p["bc"]
    std = jnp.exp(p["log_std"])
    a = mean + std * noise
    hv = jnp.tanh(state @ p["w1v"] + p["b1v"])
    hv = jnp.tanh(hv @ p["w2v"] + p["b2v"])
    v = hv @ p["wv"] + p["bv"]
    lp = -((a - mean) ** 2) / (2.0 * std * std) - p["log_std"] - 0.5 * jnp.log(
        2.0 * jnp.pi
    )
    return a, v, lp


if __name__ == "__main__":
    key = jax.random.PRNGKey(0)
    k_param, k_state, k_noise, k_state2, k_noise2 = jax.random.split(key, 5)

    batch = 8
    state_size = 16
    action_size = 4

    params = make_params(k_param, state_size, action_size, hidden=(64, 64))
    packed, meta = pack_params(params, state_size, action_size, hidden=(64, 64))

    state = jax.random.normal(k_state, (batch, state_size), dtype=jnp.float32)
    # dist.sample() randomness generated outside the kernel (deterministic here).
    # TODO(synk): could use pltpu.prng_* in-kernel if torch parity is not needed.
    noise = jax.random.normal(k_noise, (batch, action_size), dtype=jnp.float32)

    # --- f32 path: strict parity with the f32 reference -----------------------
    a, v, lp = ac_forward(state, packed, meta, noise, use_bf16=False)
    jax.block_until_ready((a, v, lp))

    a_r, v_r, lp_r = ac_forward_ref(state, params, noise)
    np.testing.assert_allclose(np.asarray(a), np.asarray(a_r), rtol=1e-5, atol=1e-5)
    np.testing.assert_allclose(np.asarray(v), np.asarray(v_r), rtol=1e-5, atol=1e-5)
    np.testing.assert_allclose(np.asarray(lp), np.asarray(lp_r), rtol=1e-5, atol=1e-5)

    # --- bf16 MXU path on a larger, padded, multi-tile batch (loose parity) ---
    batch2 = 500   # -> tb=256, grid=2, batch padding exercised
    state2 = jax.random.normal(k_state2, (batch2, state_size), dtype=jnp.float32)
    noise2 = jax.random.normal(k_noise2, (batch2, action_size), dtype=jnp.float32)
    a2, v2, lp2 = ac_forward(state2, packed, meta, noise2,
                             block_b=1024, use_bf16=True)
    jax.block_until_ready((a2, v2, lp2))
    a2_r, v2_r, lp2_r = ac_forward_ref(state2, params, noise2)
    # bf16 weights/activations => relaxed tolerance (f32 accumulation kept).
    np.testing.assert_allclose(np.asarray(a2), np.asarray(a2_r), rtol=5e-2, atol=1e-1)
    np.testing.assert_allclose(np.asarray(v2), np.asarray(v2_r), rtol=5e-2, atol=1e-1)
    np.testing.assert_allclose(np.asarray(lp2), np.asarray(lp2_r), rtol=5e-2, atol=1e-1)

    print("KERNEL_OK")
</pallas_src>

<mosaic_0001>
module attributes {stable_mosaic.version = 11 : i64} {
  func.func @ac_fused_kernel(%arg0: i32, %arg1: memref<8x16xf32, #tpu.memory_space<vmem>>, %arg2: memref<8x4xf32, #tpu.memory_space<vmem>>, %arg3: memref<280x128xf32, #tpu.memory_space<vmem>>, %arg4: memref<8x128xf32, #tpu.memory_space<vmem>>, %arg5: memref<8x128xf32, #tpu.memory_space<vmem>>) attributes {dimension_semantics = [#tpu.dimension_semantics<parallel>], iteration_bounds = array<i64: 1>, scalar_prefetch = 0 : i64, scratch_operands = 0 : i64, tpu.core_type = #tpu.core_type<tc>, window_params = [{transform_indices = @transform_0, window_bounds = array<i64: 8, 16>}, {transform_indices = @transform_1, window_bounds = array<i64: 8, 4>}, {pipeline_mode = #tpu.pipeline_mode<synchronous>, transform_indices = @transform_2, window_bounds = array<i64: 280, 128>}, {transform_indices = @transform_3, window_bounds = array<i64: 8, 128>}, {transform_indices = @transform_4, window_bounds = array<i64: 8, 128>}]} {
    %c0 = arith.constant 0 : index
    %c0_0 = arith.constant 0 : index
    %0 = vector.load %arg1[%c0, %c0_0] : memref<8x16xf32, #tpu.memory_space<vmem>>, vector<8x16xf32>
    %c0_1 = arith.constant 0 : index
    %c0_2 = arith.constant 0 : index
    %1 = vector.load %arg3[%c0_1, %c0_2] : memref<280x128xf32, #tpu.memory_space<vmem>>, vector<16x128xf32>
    %c16 = arith.constant 16 : index
    %c0_3 = arith.constant 0 : index
    %2 = vector.load %arg3[%c16, %c0_3] : memref<280x128xf32, #tpu.memory_space<vmem>>, vector<128x128xf32>
    %c144 = arith.constant 144 : index
    %c0_4 = arith.constant 0 : index
    %3 = vector.load %arg3[%c144, %c0_4] : memref<280x128xf32, #tpu.memory_space<vmem>>, vector<128x128xf32>
    %c272 = arith.constant 272 : index
    %c0_5 = arith.constant 0 : index
    %4 = vector.load %arg3[%c272, %c0_5] : memref<280x128xf32, #tpu.memory_space<vmem>>, vector<1x128xf32>
    %c273 = arith.constant 273 : index
    %c0_6 = arith.constant 0 : index
    %5 = vector.load %arg3[%c273, %c0_6] : memref<280x128xf32, #tpu.memory_space<vmem>>, vector<1x128xf32>
    %c274 = arith.constant 274 : index
    %c0_7 = arith.constant 0 : index
    %6 = vector.load %arg3[%c274, %c0_7] : memref<280x128xf32, #tpu.memory_space<vmem>>, vector<1x128xf32>
    %c275 = arith.constant 275 : index
    %c0_8 = arith.constant 0 : index
    %7 = vector.load %arg3[%c275, %c0_8] : memref<280x128xf32, #tpu.memory_space<vmem>>, vector<1x128xf32>
    %cst = arith.constant dense<0.000000e+00> : vector<8x128xf32>
    %8 = tpu.matmul %0, %1, %cst {dimension_numbers = #tpu.dot_dimension_numbers<[1], [0], [0], [1], [0, 0, 1, 1], [], []>} : vector<8x16xf32>, vector<16x128xf32>, vector<8x128xf32> -> vector<8x128xf32>
    %9 = vector.broadcast %4 : vector<1x128xf32> to vector<8x128xf32>
    %10 = arith.addf %8, %9 : vector<8x128xf32>
    %11 = math.tanh %10 : vector<8x128xf32>
    %cst_9 = arith.constant dense<0.000000e+00> : vector<8x128xf32>
    %12 = tpu.matmul %11, %2, %cst_9 {dimension_numbers = #tpu.dot_dimension_numbers<[1], [0], [0], [1], [0, 0, 1, 1], [], []>} : vector<8x128xf32>, vector<128x128xf32>, vector<8x128xf32> -> vector<8x128xf32>
    %13 = vector.broadcast %5 : vector<1x128xf32> to vector<8x128xf32>
    %14 = arith.addf %12, %13 : vector<8x128xf32>
    %15 = math.tanh %14 : vector<8x128xf32>
    %cst_10 = arith.constant dense<0.000000e+00> : vector<8x128xf32>
    %16 = tpu.matmul %15, %3, %cst_10 {dimension_numbers = #tpu.dot_dimension_numbers<[1], [0], [0], [1], [0, 0, 1, 1], [], []>} : vector<8x128xf32>, vector<128x128xf32>, vector<8x128xf32> -> vector<8x128xf32>
    %17 = vector.broadcast %6 : vector<1x128xf32> to vector<8x128xf32>
    %18 = arith.addf %16, %17 : vector<8x128xf32>
    %c0_11 = arith.constant 0 : index
    %c0_12 = arith.constant 0 : index
    %19 = vector.load %arg2[%c0_11, %c0_12] : memref<8x4xf32, #tpu.memory_space<vmem>>, vector<8x4xf32>
    %cst_13 = arith.constant 0.000000e+00 : f32
    %20 = vector.broadcast %cst_13 : f32 to vector<8x124xf32>
    %21 = tpu.concatenate %19, %20 in 1 : vector<8x4xf32>, vector<8x124xf32> -> vector<8x128xf32>
    %22 = math.exp %7 : vector<1x128xf32>
    %23 = vector.broadcast %22 : vector<1x128xf32> to vector<8x128xf32>
    %24 = arith.mulf %23, %21 : vector<8x128xf32>
    %25 = arith.addf %18, %24 : vector<8x128xf32>
    %c0_14 = arith.constant 0 : index
    %c0_15 = arith.constant 0 : index
    %26 = vector.load %arg4[%c0_14, %c0_15] : memref<8x128xf32, #tpu.memory_space<vmem>>, vector<8x128xf32>
    tpu.vector_store %arg4[%c0_14, %c0_15], %25 {strides = array<i32>} : memref<8x128xf32, #tpu.memory_space<vmem>>, vector<8x128xf32>,
    %27 = arith.mulf %21, %21 : vector<8x128xf32>
    %cst_16 = arith.constant -5.000000e-01 : f32
    %28 = vector.broadcast %cst_16 : f32 to vector<8x128xf32>
    %29 = arith.mulf %28, %27 : vector<8x128xf32>
    %30 = vector.broadcast %7 : vector<1x128xf32> to vector<8x128xf32>
    %31 = arith.subf %29, %30 : vector<8x128xf32>
    %cst_17 = arith.constant -0.918938517 : f32
    %32 = vector.broadcast %cst_17 : f32 to vector<8x128xf32>
    %33 = arith.addf %31, %32 : vector<8x128xf32>
    %c0_18 = arith.constant 0 : index
    %c0_19 = arith.constant 0 : index
    %34 = vector.load %arg5[%c0_18, %c0_19] : memref<8x128xf32, #tpu.memory_space<vmem>>, vector<8x128xf32>
    tpu.vector_store %arg5[%c0_18, %c0_19], %33 {strides = array<i32>} : memref<8x128xf32, #tpu.memory_space<vmem>>, vector<8x128xf32>,
    return
  }
  func.func @transform_0(%arg0: i32) -> (i32, i32) {
    %c0_i32 = arith.constant 0 : i32
    %c0_i32_0 = arith.constant 0 : i32
    return %arg0, %c0_i32 : i32, i32
  }
  func.func @transform_1(%arg0: i32) -> (i32, i32) {
    %c0_i32 = arith.constant 0 : i32
    %c0_i32_0 = arith.constant 0 : i32
    return %arg0, %c0_i32 : i32, i32
  }
  func.func @transform_2(%arg0: i32) -> (i32, i32) {
    %c0_i32 = arith.constant 0 : i32
    %c0_i32_0 = arith.constant 0 : i32
    %c0_i32_1 = arith.constant 0 : i32
    return %c0_i32, %c0_i32_0 : i32, i32
  }
  func.func @transform_3(%arg0: i32) -> (i32, i32) {
    %c0_i32 = arith.constant 0 : i32
    %c0_i32_0 = arith.constant 0 : i32
    return %arg0, %c0_i32 : i32, i32
  }
  func.func @transform_4(%arg0: i32) -> (i32, i32) {
    %c0_i32 = arith.constant 0 : i32
    %c0_i32_0 = arith.constant 0 : i32
    return %arg0, %c0_i32 : i32, i32
  }
}

</mosaic_0001>

<llo_original>
// kernel: tpu_custom_call.1
$region0: #{tpu_custom_call.1}
  #allocation0 [shape = 'u32[]', space=smem, size = 0x4, offset = 0x4, fixed_abs, tag = 'smem constant byte address 0x4 - core index']
  #allocation1 [shape = 'u32[144,128]{1,0:T(1,128)}', space=vmem, size = 0x12000, scoped, tag = 'internal scratch']
  %s0 = inlined_call_operand.vmem [shape: f32[8,16], index: 0, kind: input, shape index: {}]
  %s1 = inlined_call_operand.vmem [shape: f32[8,4], index: 1, kind: input, shape index: {}]
  %s2 = inlined_call_operand.hbm [shape: f32[280,128], index: 2, kind: input, shape index: {}]
  %s3 = inlined_call_operand.hbm [shape: f32[8,128], index: 3, kind: output, shape index: {0}]
  %s4 = inlined_call_operand.hbm [shape: f32[8,128], index: 4, kind: output, shape index: {1}]
  %5 = xla_tuple %s3, %s4
  %s6 = sld [smem:[#allocation0]]
  $region34: #{tpu_custom_call.1} parent=0
    _
  %s8 = ssub.s32 1, %s6
  %s9 = scalar_select 0, %s8, %s6
  $region1: #{tpu_custom_call.1} parent=0
    #allocation2 [shape = 'u8[143360]{0}', space=vmem, size = 0x23000, scoped, tag = 'input window, operand 2, single buffered']
    #allocation3 [shape = 's32[1]{0}', space=sflag, size = 0x4, scoped, tag = 'scoped memory for tpu_custom_call.1']
    #allocation4 [shape = 's32[1]{0}', space=sflag, size = 0x4, scoped, tag = 'scoped memory for tpu_custom_call.1']
    #allocation5 [shape = 'u8[4096]{0}', space=vmem, size = 0x1000, scoped, tag = 'output window, operand 0, single buffered']
    #allocation6 [shape = 'u8[4096]{0}', space=vmem, size = 0x1000, scoped, tag = 'output window, operand 1, single buffered']
    #allocation7 [shape = 's32[1]{0}', space=sflag, size = 0x4, scoped, tag = 'scoped memory for tpu_custom_call.1']
    %10 = vsyncpa [#allocation3], 0
    %11 = vsyncpa [#allocation4], 0
    %12 = vsyncpa [#allocation7], 0
    // Predicated region
    $region2: #{tpu_custom_call.1} parent=1 // pred_check
      _
    $region3: #{tpu_custom_call.1} parent=1 // pred_check_branch
      %14 = sbr.rel (0) target = $region5
    $region4: #{tpu_custom_call.1} parent=1 // pred_region
      _
    $region5: #{tpu_custom_call.1} parent=1 // pred_fallthru
      _
    // Predicated region
    $region6: #{tpu_custom_call.1} parent=1 // pred_check
      _
    $region7: #{tpu_custom_call.1} parent=1 // pred_check_branch
      %16 = sbr.rel (0) target = $region9
    $region8: #{tpu_custom_call.1} parent=1 // pred_region
      _
    $region9: #{tpu_custom_call.1} parent=1 // pred_fallthru
      _
    // Predicated region
    $region10: #{tpu_custom_call.1} parent=1 // pred_check
      _
    $region11: #{tpu_custom_call.1} parent=1 // pred_check_branch
      %18 = sbr.rel (0) target = $region13
    $region12: #{tpu_custom_call.1} parent=1 // pred_region
      %s20 = ssub.s32 4480, 4480
      %21 = vsyncadd [#allocation3], %s20
      %s22 = sshll.u32 [#allocation2], 4
      %s23 = int_to_ptr.vmem [resolvable:$true] %s22
      %28 = dma.hbm_to_vmem [thread:$0]  %s2, 4480, %s23, [#allocation3], 128, 128, 8
    $region13: #{tpu_custom_call.1} parent=1 // pred_fallthru
      _
    // Predicated region
    $region14: #{tpu_custom_call.1} parent=1 // pred_check
      _
    $region15: #{tpu_custom_call.1} parent=1 // pred_check_branch
      %30 = sbr.rel (0) target = $region17
    $region16: #{tpu_custom_call.1} parent=1 // pred_region
      %31 = dma.done [#allocation3], 4480
    $region17: #{tpu_custom_call.1} parent=1 // pred_fallthru
      _
    %v32 = vld [vmem:[%s0] sm:$0xff]
    %v33 = vld [vmem:[#allocation2] sm:$0xff]
    %v34 = vld [vmem:[#allocation2 + $0x8] sm:$0xff]
    %v35 = vld [vmem:[#allocation2 + $0x10] sm:$0xff]
    %v36 = vld [vmem:[#allocation2 + $0x18] sm:$0xff]
    %v37 = vld [vmem:[#allocation2 + $0x20] sm:$0xff]
    %v38 = vld [vmem:[#allocation2 + $0x28] sm:$0xff]
    %v39 = vld [vmem:[#allocation2 + $0x30] sm:$0xff]
    %v40 = vld [vmem:[#allocation2 + $0x38] sm:$0xff]
    %v41 = vld [vmem:[#allocation2 + $0x40] sm:$0xff]
    %v42 = vld [vmem:[#allocation2 + $0x48] sm:$0xff]
    %v43 = vld [vmem:[#allocation2 + $0x50] sm:$0xff]
    %v44 = vld [vmem:[#allocation2 + $0x58] sm:$0xff]
    %v45 = vld [vmem:[#allocation2 + $0x60] sm:$0xff]
    %v46 = vld [vmem:[#allocation2 + $0x68] sm:$0xff]
    %v47 = vld [vmem:[#allocation2 + $0x70] sm:$0xff]
    %v48 = vld [vmem:[#allocation2 + $0x78] sm:$0xff]
    %v49 = vld [vmem:[#allocation2 + $0x80] sm:$0xff]
    %v50 = vld [vmem:[#allocation2 + $0x88] sm:$0xff]
    %v51 = vld [vmem:[#allocation2 + $0x90] sm:$0xff]
    %v52 = vld [vmem:[#allocation2 + $0x98] sm:$0xff]
    %v53 = vld [vmem:[#allocation2 + $0xa0] sm:$0xff]
    %v54 = vld [vmem:[#allocation2 + $0xa8] sm:$0xff]
    %v55 = vld [vmem:[#allocation2 + $0xb0] sm:$0xff]
    %v56 = vld [vmem:[#allocation2 + $0xb8] sm:$0xff]
    %v57 = vld [vmem:[#allocation2 + $0xc0] sm:$0xff]
    %v58 = vld [vmem:[#allocation2 + $0xc8] sm:$0xff]
    %v59 = vld [vmem:[#allocation2 + $0xd0] sm:$0xff]
    %v60 = vld [vmem:[#allocation2 + $0xd8] sm:$0xff]
    %v61 = vld [vmem:[#allocation2 + $0xe0] sm:$0xff]
    %v62 = vld [vmem:[#allocation2 + $0xe8] sm:$0xff]
    %v63 = vld [vmem:[#allocation2 + $0xf0] sm:$0xff]
    %v64 = vld [vmem:[#allocation2 + $0xf8] sm:$0xff]
    %v65 = vld [vmem:[#allocation2 + $0x100] sm:$0xff]
    %v66 = vld [vmem:[#allocation2 + $0x108] sm:$0xff]
    %v67 = vld [vmem:[#allocation2 + $0x110] sm:$0x1]
    %v68 = vld [vmem:[#allocation2 + $0x111] sm:$0x1]
    %v69 = vld [vmem:[#allocation2 + $0x112] sm:$0x1]
    %v70 = vld [vmem:[#allocation2 + $0x113] sm:$0x1]
    %v71 = vlaneseq
    %v72 = vshrl.u32 %v71, 7
    %v73 = vsub.s32 0, %v72
    %v74 = vrot.slane %v67, %v73
    %vm75 = vcmask 130048
    %v77 = vsel %vm75, %v32, 0
    %79 = vmatprep.subr.mxu0 0.0
    %80 = vmatpush1.msra.mxu0 %v33
    %81 = vmatprep.subr.mxu0 0.0
    %82 = vmatpush1.msra.mxu0 %v34
    %83 = vmatprep.subr.mxu0 0.0
    %84 = vmatpush1.msra.mxu0 0.0
    %85 = vmatprep.subr.mxu0 0.0
    %86 = vmatpush1.msra.mxu0 0.0
    %87 = vmatprep.subr.mxu0 0.0
    %88 = vmatpush1.msra.mxu0 0.0
    %89 = vmatprep.subr.mxu0 0.0
    %90 = vmatpush1.msra.mxu0 0.0
    %91 = vmatprep.subr.mxu0 0.0
    %92 = vmatpush1.msra.mxu0 0.0
    %93 = vmatprep.subr.mxu0 0.0
    %94 = vmatpush1.msra.mxu0 0.0
    %95 = vmatprep.subr.mxu0 0.0
    %96 = vmatpush1.msra.mxu0 0.0
    %97 = vmatprep.subr.mxu0 0.0
    %98 = vmatpush1.msra.mxu0 0.0
    %99 = vmatprep.subr.mxu0 0.0
    %100 = vmatpush1.msra.mxu0 0.0
    %101 = vmatprep.subr.mxu0 0.0
    %102 = vmatpush1.msra.mxu0 0.0
    %103 = vmatprep.subr.mxu0 0.0
    %104 = vmatpush1.msra.mxu0 0.0
    %105 = vmatprep.subr.mxu0 0.0
    %106 = vmatpush1.msra.mxu0 0.0
    %107 = vmatprep.subr.mxu0 0.0
    %108 = vmatpush1.msra.mxu0 0.0
    %109 = vmatprep.subr.mxu0 0.0
    %110 = vmatpush1.msra.mxu0 0.0
    %111 = vmatprep.subr.mxu0 0.0
    %112 = vmatpush1.msra.mxu0 0.0
    %113 = vmatprep.subr.mxu0 0.0
    %114 = vmatpush1.msra.mxu0 0.0
    %115 = vmatprep.subr.mxu0 0.0
    %116 = vmatpush1.msra.mxu0 0.0
    %117 = vmatprep.subr.mxu0 0.0
    %118 = vmatpush1.msra.mxu0 0.0
    %119 = vmatprep.subr.mxu0 0.0
    %120 = vmatpush1.msra.mxu0 0.0
    %121 = vmatprep.subr.mxu0 0.0
    %122 = vmatpush1.msra.mxu0 0.0
    %123 = vmatprep.subr.mxu0 0.0
    %124 = vmatpush1.msra.mxu0 0.0
    %125 = vmatprep.subr.mxu0 0.0
    %126 = vmatpush1.msra.mxu0 0.0
    %127 = vmatprep.subr.mxu0 0.0
    %128 = vmatpush1.msra.mxu0 0.0
    %129 = vmatprep.subr.mxu0 0.0
    %130 = vmatpush1.msra.mxu0 0.0
    %131 = vmatprep.subr.mxu0 0.0
    %132 = vmatpush1.msra.mxu0 0.0
    %133 = vmatprep.subr.mxu0 0.0
    %134 = vmatpush1.msra.mxu0 0.0
    %135 = vmatprep.subr.mxu0 0.0
    %136 = vmatpush1.msra.mxu0 0.0
    %137 = vmatprep.subr.mxu0 0.0
    %138 = vmatpush1.msra.mxu0 0.0
    %139 = vmatprep.subr.mxu0 0.0
    %140 = vmatpush1.msra.mxu0 0.0
    %141 = vmatprep.subr.mxu0 0.0
    %142 = vmatpush1.msra.mxu0 0.0
    %143 = vmatprep.mubr.f32.mxu0 0.0
    %144 = vmatmul.mubr.f32.gmra.mrb[0].mxu0 %v77
    %v145 = vpop.f32.mrb[0].mxu0
    %v146 = vadd.f32 %v74, %v145
    %v147 = vpop.f32.mrb[0].mxu0
    %148 = vdwg.mxu0
    %v149 = vtanh.pop %v146
    %v150 = vlaneseq
    %v151 = vshrl.u32 %v150, 7
    %v152 = vsub.s32 0, %v151
    %v153 = vrot.slane %v68, %v152
    %154 = vmatprep.subr.mxu0 0.0
    %155 = vmatpush1.msra.mxu0 %v35
    %156 = vmatprep.subr.mxu0 0.0
    %157 = vmatpush1.msra.mxu0 %v36
    %158 = vmatprep.subr.mxu0 0.0
    %159 = vmatpush1.msra.mxu0 %v37
    %160 = vmatprep.subr.mxu0 0.0
    %161 = vmatpush1.msra.mxu0 %v38
    %162 = vmatprep.subr.mxu0 0.0
    %163 = vmatpush1.msra.mxu0 %v39
    %164 = vmatprep.subr.mxu0 0.0
    %165 = vmatpush1.msra.mxu0 %v40
    %166 = vmatprep.subr.mxu0 0.0
    %167 = vmatpush1.msra.mxu0 %v41
    %168 = vmatprep.subr.mxu0 0.0
    %169 = vmatpush1.msra.mxu0 %v42
    %170 = vmatprep.subr.mxu0 0.0
    %171 = vmatpush1.msra.mxu0 %v43
    %172 = vmatprep.subr.mxu0 0.0
    %173 = vmatpush1.msra.mxu0 %v44
    %174 = vmatprep.subr.mxu0 0.0
    %175 = vmatpush1.msra.mxu0 %v45
    %176 = vmatprep.subr.mxu0 0.0
    %177 = vmatpush1.msra.mxu0 %v46
    %178 = vmatprep.subr.mxu0 0.0
    %179 = vmatpush1.msra.mxu0 %v47
    %180 = vmatprep.subr.mxu0 0.0
    %181 = vmatpush1.msra.mxu0 %v48
    %182 = vmatprep.subr.mxu0 0.0
    %183 = vmatpush1.msra.mxu0 %v49
    %184 = vmatprep.subr.mxu0 0.0
    %185 = vmatpush1.msra.mxu0 %v50
    %186 = vmatprep.subr.mxu0 0.0
    %187 = vmatpush1.msra.mxu0 0.0
    %188 = vmatprep.subr.mxu0 0.0
    %189 = vmatpush1.msra.mxu0 0.0
    %190 = vmatprep.subr.mxu0 0.0
    %191 = vmatpush1.msra.mxu0 0.0
    %192 = vmatprep.subr.mxu0 0.0
    %193 = vmatpush1.msra.mxu0 0.0
    %194 = vmatprep.subr.mxu0 0.0
    %195 = vmatpush1.msra.mxu0 0.0
    %196 = vmatprep.subr.mxu0 0.0
    %197 = vmatpush1.msra.mxu0 0.0
    %198 = vmatprep.subr.mxu0 0.0
    %199 = vmatpush1.msra.mxu0 0.0
    %200 = vmatprep.subr.mxu0 0.0
    %201 = vmatpush1.msra.mxu0 0.0
    %202 = vmatprep.subr.mxu0 0.0
    %203 = vmatpush1.msra.mxu0 0.0
    %204 = vmatprep.subr.mxu0 0.0
    %205 = vmatpush1.msra.mxu0 0.0
    %206 = vmatprep.subr.mxu0 0.0
    %207 = vmatpush1.msra.mxu0 0.0
    %208 = vmatprep.subr.mxu0 0.0
    %209 = vmatpush1.msra.mxu0 0.0
    %210 = vmatprep.subr.mxu0 0.0
    %211 = vmatpush1.msra.mxu0 0.0
    %212 = vmatprep.subr.mxu0 0.0
    %213 = vmatpush1.msra.mxu0 0.0
    %214 = vmatprep.subr.mxu0 0.0
    %215 = vmatpush1.msra.mxu0 0.0
    %216 = vmatprep.subr.mxu0 0.0
    %217 = vmatpush1.msra.mxu0 0.0
    %218 = vmatprep.mubr.f32.mxu0 0.0
    %219 = vmatmul.mubr.f32.gmra.mrb[0].mxu0 %v149
    %v220 = vpop.f32.mrb[0].mxu0
    %v221 = vadd.f32 %v153, %v220
    %v222 = vpop.f32.mrb[0].mxu0
    %223 = vdwg.mxu0
    %v224 = vtanh.pop %v221
    %v225 = vlaneseq
    %v226 = vshrl.u32 %v225, 7
    %v227 = vsub.s32 0, %v226
    %v228 = vrot.slane %v69, %v227
    %229 = vmatprep.subr.mxu0 0.0
    %230 = vmatpush1.msra.mxu0 %v51
    %231 = vmatprep.subr.mxu0 0.0
    %232 = vmatpush1.msra.mxu0 %v52
    %233 = vmatprep.subr.mxu0 0.0
    %234 = vmatpush1.msra.mxu0 %v53
    %235 = vmatprep.subr.mxu0 0.0
    %236 = vmatpush1.msra.mxu0 %v54
    %237 = vmatprep.subr.mxu0 0.0
    %238 = vmatpush1.msra.mxu0 %v55
    %239 = vmatprep.subr.mxu0 0.0
    %240 = vmatpush1.msra.mxu0 %v56
    %241 = vmatprep.subr.mxu0 0.0
    %242 = vmatpush1.msra.mxu0 %v57
    %243 = vmatprep.subr.mxu0 0.0
    %244 = vmatpush1.msra.mxu0 %v58
    %245 = vmatprep.subr.mxu0 0.0
    %246 = vmatpush1.msra.mxu0 %v59
    %247 = vmatprep.subr.mxu0 0.0
    %248 = vmatpush1.msra.mxu0 %v60
    %249 = vmatprep.subr.mxu0 0.0
    %250 = vmatpush1.msra.mxu0 %v61
    %251 = vmatprep.subr.mxu0 0.0
    %252 = vmatpush1.msra.mxu0 %v62
    %253 = vmatprep.subr.mxu0 0.0
    %254 = vmatpush1.msra.mxu0 %v63
    %255 = vmatprep.subr.mxu0 0.0
    %256 = vmatpush1.msra.mxu0 %v64
    %257 = vmatprep.subr.mxu0 0.0
    %258 = vmatpush1.msra.mxu0 %v65
    %259 = vmatprep.subr.mxu0 0.0
    %260 = vmatpush1.msra.mxu0 %v66
    %261 = vmatprep.subr.mxu0 0.0
    %262 = vmatpush1.msra.mxu0 0.0
    %263 = vmatprep.subr.mxu0 0.0
    %264 = vmatpush1.msra.mxu0 0.0
    %265 = vmatprep.subr.mxu0 0.0
    %266 = vmatpush1.msra.mxu0 0.0
    %267 = vmatprep.subr.mxu0 0.0
    %268 = vmatpush1.msra.mxu0 0.0
    %269 = vmatprep.subr.mxu0 0.0
    %270 = vmatpush1.msra.mxu0 0.0
    %271 = vmatprep.subr.mxu0 0.0
    %272 = vmatpush1.msra.mxu0 0.0
    %273 = vmatprep.subr.mxu0 0.0
    %274 = vmatpush1.msra.mxu0 0.0
    %275 = vmatprep.subr.mxu0 0.0
    %276 = vmatpush1.msra.mxu0 0.0
    %277 = vmatprep.subr.mxu0 0.0
    %278 = vmatpush1.msra.mxu0 0.0
    %279 = vmatprep.subr.mxu0 0.0
    %280 = vmatpush1.msra.mxu0 0.0
    %281 = vmatprep.subr.mxu0 0.0
    %282 = vmatpush1.msra.mxu0 0.0
    %283 = vmatprep.subr.mxu0 0.0
    %284 = vmatpush1.msra.mxu0 0.0
    %285 = vmatprep.subr.mxu0 0.0
    %286 = vmatpush1.msra.mxu0 0.0
    %287 = vmatprep.subr.mxu0 0.0
    %288 = vmatpush1.msra.mxu0 0.0
    %289 = vmatprep.subr.mxu0 0.0
    %290 = vmatpush1.msra.mxu0 0.0
    %291 = vmatprep.subr.mxu0 0.0
    %292 = vmatpush1.msra.mxu0 0.0
    %293 = vmatprep.mubr.f32.mxu0 0.0
    %294 = vmatmul.mubr.f32.gmra.mrb[0].mxu0 %v224
    %v295 = vpop.f32.mrb[0].mxu0
    %v296 = vadd.f32 %v228, %v295
    %v297 = vpop.f32.mrb[0].mxu0
    %298 = vdwg.mxu0
    %v299 = vld [vmem:[%s1] sm:$0xff]
    %vm300 = vcmask 31744
    %v301 = vsel %vm300, %v299, 0.0
    %v302 = vmul.f32 %v70, 1.442695
    %v303 = vpow.pop %v302
    %v304 = vlaneseq
    %v305 = vshrl.u32 %v304, 7
    %v306 = vsub.s32 0, %v305
    %v307 = vrot.slane %v303, %v306
    %v308 = vmul.f32 %v307, %v301
    %v309 = vadd.f32 %v296, %v308
    %310 = vst [vmem:[#allocation5] sm:$0xff] %v309
    %v311 = vmul.f32 %v301, %v301
    %v312 = vmul.f32 %v311, -0.5
    %v313 = vlaneseq
    %v314 = vshrl.u32 %v313, 7
    %v315 = vsub.s32 0, %v314
    %v316 = vrot.slane %v70, %v315
    %v317 = vsub.f32 %v312, %v316
    %v318 = vadd.f32 %v317, -0.9189385
    %319 = vst [vmem:[#allocation6] sm:$0xff] %v318
    // Predicated region
    $region18: #{tpu_custom_call.1} parent=1 // pred_check
      _
    $region19: #{tpu_custom_call.1} parent=1 // pred_check_branch
      %321 = sbr.rel (0) target = $region21
    $region20: #{tpu_custom_call.1} parent=1 // pred_region
      %s323 = ssub.s32 128, 128
      %324 = vsyncadd [#allocation4], %s323
      %s326 = sshll.u32 [#allocation5], 4
      %s327 = int_to_ptr.vmem [resolvable:$true] %s326
      %329 = dma.vmem_to_hbm [thread:$0]  %s327, 128, %s3, [#allocation4]
    $region21: #{tpu_custom_call.1} parent=1 // pred_fallthru
      _
    // Predicated region
    $region22: #{tpu_custom_call.1} parent=1 // pred_check
      _
    $region23: #{tpu_custom_call.1} parent=1 // pred_check_branch
      %331 = sbr.rel (0) target = $region25
    $region24: #{tpu_custom_call.1} parent=1 // pred_region
      %s333 = ssub.s32 128, 128
      %334 = vsyncadd [#allocation7], %s333
      %s336 = sshll.u32 [#allocation6], 4
      %s337 = int_to_ptr.vmem [resolvable:$true] %s336
      %339 = dma.vmem_to_hbm [thread:$0]  %s337, 128, %s4, [#allocation7]
    $region25: #{tpu_custom_call.1} parent=1 // pred_fallthru
      _
    // Predicated region
    $region26: #{tpu_custom_call.1} parent=1 // pred_check
      _
    $region27: #{tpu_custom_call.1} parent=1 // pred_check_branch
      %341 = sbr.rel (0) target = $region29
    $region28: #{tpu_custom_call.1} parent=1 // pred_region
      %342 = dma.done [#allocation4], 128
    $region29: #{tpu_custom_call.1} parent=1 // pred_fallthru
      _
    // Predicated region
    $region30: #{tpu_custom_call.1} parent=1 // pred_check
      _
    $region31: #{tpu_custom_call.1} parent=1 // pred_check_branch
      %344 = sbr.rel (0) target = $region33
    $region32: #{tpu_custom_call.1} parent=1 // pred_region
      %345 = dma.done [#allocation7], 128
    $region33: #{tpu_custom_call.1} parent=1 // pred_fallthru
      _
    %346 = vsyncpa [#allocation3], 1
    %347 = vsyncpa [#allocation4], 1
    %348 = vsyncpa [#allocation7], 1

</llo_original>
